<compile_context>
chip_gen: v7x
topology: tpu7x:2x2x1
jax: 0.10.0
libtpu: 0.0.40
codegen_flags: <defaults>
</compile_context>

<pallas_src>
import jax
import jax.numpy as jnp
from jax.experimental import pallas as pl
from jax.experimental.pallas import tpu as pltpu

_EPS = 1e-6  # TODO(synk): eps of InverseDistanceWithParam assumed, not known exactly.


def _idw_kernel(power_ref, xq_ref, xt_ref, yb_ref, yint_ref, covar_ref):
    p = power_ref[0]                          # scalar power parameter (SMEM)
    xq = xq_ref[...]                          # (TM, D) pre-scaled query rows
    xt = xt_ref[...]                          # (D, N)  pre-scaled all points, lane-dense

    # Pairwise squared distances via explicit coordinate differences on the VPU.
    # (K=3 contracted on the MXU is <3% utilization, and the gram-matrix form
    #  cancels catastrophically for nearby points; this form gives exact zeros
    #  on the diagonal so K_ii = 1/eps deterministically.)
    diff = xq[:, 0:1] - xt[0:1, :]            # (TM, N)
    d2 = diff * diff
    for d in range(1, xq.shape[1]):           # static unroll over the 3 ARD dims
        diff = xq[:, d:d + 1] - xt[d:d + 1, :]
        d2 = d2 + diff * diff

    # d^p with the sqrt fused into the pow: d^p = exp(0.5 * p * log(d2)).
    # Coincident points (d2 == 0) -> d^p = 0 -> K = 1/eps.
    dp = jnp.where(d2 > 0.0,
                   jnp.exp((0.5 * p) * jnp.log(jnp.maximum(d2, 1e-30))),
                   0.0)
    # NOTE: pl.reciprocal(dp + _EPS, approx=True) is a drop-in EUP-only variant
    # if downstream tolerance allows the ~2^-12 relative error on covar.
    k = 1.0 / (dp + _EPS)                     # (TM, N)

    covar_ref[...] = k.astype(covar_ref.dtype)

    # num and den in a single MXU pass against the resident [y | 1] block:
    # nd[:, 0] = K @ y, nd[:, 1] = K @ 1  -> no cross-lane reduction needed.
    nd = jnp.dot(k, yb_ref[...], preferred_element_type=jnp.float32)   # (TM, 2)
    yint_ref[...] = (nd[:, 0:1] / nd[:, 1:2]).astype(yint_ref.dtype)


def weighted_inverse_distance_forward(x, y, lengthscale, power, *, tm=None):
    """x: (N, D) f32, y: (N, 1) f32, lengthscale: (1, D) f32, power: (1,) f32."""
    N, D = x.shape

    if tm is None:
        tm = min(512, N)
        # keep >= 2 row tiles so the parallel grid axis shards across both
        # v7x TensorCores (and gives the pipeline some depth)
        while tm > 8 and N // tm < 2:
            tm //= 2
        # v7x-aware VMEM cap: ~6x the (tm, N) covar tile of live f32 data
        while tm > 8 and 6 * tm * N * 4 > 40 * 1024 * 1024:
            tm //= 2
    assert N % tm == 0, "pad N to a multiple of the row tile"
    grid = (N // tm,)

    # Hoisted per-point preprocessing (done once, outside the grid loop):
    xs = x / lengthscale                                   # (N, D) pre-scaled
    xs_t = xs.T                                            # (D, N) lane-dense resident copy
    yb = jnp.concatenate([y, jnp.ones_like(y)], axis=1)    # (N, 2) = [y | 1]

    covar_tile_bytes = tm * N * 4
    vmem_bytes = (2 * covar_tile_bytes                     # double-buffered covar out tile
                  + 4 * covar_tile_bytes                   # live (tm, N) intermediates
                  + 2 * tm * 128 * 4                       # double-buffered (tm, D) query tile
                  + 2 * (8 * N * 4 + N * 128 * 4)          # resident xs^T and [y|1] (padded)
                  + (1 << 20))
    vmem_limit = int(min(max(vmem_bytes, 16 << 20), 60 << 20))

    yint, covar = pl.pallas_call(
        _idw_kernel,
        out_shape=(
            jax.ShapeDtypeStruct((N, 1), jnp.float32),
            jax.ShapeDtypeStruct((N, N), jnp.float32),
        ),
        grid_spec=pltpu.PrefetchScalarGridSpec(
            num_scalar_prefetch=0,
            grid=grid,
            in_specs=[
                pl.BlockSpec(memory_space=pltpu.MemorySpace.SMEM),   # power (1,) scalar
                pl.BlockSpec((tm, D), lambda i: (i, 0)),             # pre-scaled query rows
                pl.BlockSpec((D, N), lambda i: (0, 0)),              # pre-scaled x^T, resident
                pl.BlockSpec((N, 2), lambda i: (0, 0)),              # [y | 1], resident
            ],
            out_specs=[
                pl.BlockSpec((tm, 1), lambda i: (i, 0)),             # y_int row tile
                pl.BlockSpec((tm, N), lambda i: (i, 0)),             # covar row tile (lane-dense)
            ],
        ),
        compiler_params=pltpu.CompilerParams(
            dimension_semantics=("parallel",),
            vmem_limit_bytes=vmem_limit),
    )(power, xs, xs_t, yb)
    return yint, covar


def _reference(x, y, lengthscale, power):
    xs = x / lengthscale
    diff = xs[:, None, :] - xs[None, :, :]
    d2 = jnp.sum(diff * diff, axis=-1)
    dp = jnp.where(d2 > 0.0,
                   jnp.exp(0.5 * power[0] * jnp.log(jnp.maximum(d2, 1e-30))),
                   0.0)
    k = 1.0 / (dp + _EPS)
    return (k @ y) / (k @ jnp.ones_like(y)), k


if __name__ == "__main__":
    key = jax.random.PRNGKey(0)
    N, D = 256, 3                              # D=3 matches the 3-dim lengthscale constraint
    kx, ky = jax.random.split(key)
    x = jax.random.uniform(kx, (N, D), jnp.float32, minval=0.0, maxval=10.0)
    y = jax.random.normal(ky, (N, 1), jnp.float32)

    # Deterministic parameter init: lengthscales at constraint-interval midpoints,
    # power parameter = 2.0 (classic IDW exponent).
    lengthscale = jnp.array(
        [[(24.6 + 40.13) / 2, (24.6 + 40.13) / 2, (5.0 + 13.0) / 2]], dtype=jnp.float32)
    power = jnp.array([2.0], dtype=jnp.float32)

    y_int, covar = weighted_inverse_distance_forward(x, y, lengthscale, power)
    jax.block_until_ready((y_int, covar))

    y_ref, k_ref = _reference(x, y, lengthscale, power)
    assert jnp.allclose(y_int, y_ref, atol=1e-4, rtol=1e-4)
    assert jnp.allclose(covar, k_ref, atol=1e-2, rtol=1e-3)

    print("KERNEL_OK")
</pallas_src>

<mosaic_0001>
module attributes {stable_mosaic.version = 11 : i64} {
  func.func @_idw_kernel(%arg0: i32, %arg1: memref<1xf32, #tpu.memory_space<smem>>, %arg2: memref<128x3xf32, #tpu.memory_space<vmem>>, %arg3: memref<3x256xf32, #tpu.memory_space<vmem>>, %arg4: memref<256x2xf32, #tpu.memory_space<vmem>>, %arg5: memref<128x1xf32, #tpu.memory_space<vmem>>, %arg6: memref<128x256xf32, #tpu.memory_space<vmem>>) attributes {dimension_semantics = [#tpu.dimension_semantics<parallel>], iteration_bounds = array<i64: 2>, scalar_prefetch = 0 : i64, scratch_operands = 0 : i64, tpu.core_type = #tpu.core_type<tc>, window_params = [{transform_indices = @transform_0, window_bounds = array<i64: 1>}, {transform_indices = @transform_1, window_bounds = array<i64: 128, 3>}, {pipeline_mode = #tpu.pipeline_mode<synchronous>, transform_indices = @transform_2, window_bounds = array<i64: 3, 256>}, {pipeline_mode = #tpu.pipeline_mode<synchronous>, transform_indices = @transform_3, window_bounds = array<i64: 256, 2>}, {transform_indices = @transform_4, window_bounds = array<i64: 128, 1>}, {transform_indices = @transform_5, window_bounds = array<i64: 128, 256>}]} {
    %c0 = arith.constant 0 : index
    %0 = memref.load %arg1[%c0] : memref<1xf32, #tpu.memory_space<smem>>
    %c0_0 = arith.constant 0 : index
    %c0_1 = arith.constant 0 : index
    %1 = vector.load %arg2[%c0_0, %c0_1] : memref<128x3xf32, #tpu.memory_space<vmem>>, vector<128x3xf32>
    %c0_2 = arith.constant 0 : index
    %c0_3 = arith.constant 0 : index
    %2 = vector.load %arg3[%c0_2, %c0_3] : memref<3x256xf32, #tpu.memory_space<vmem>>, vector<3x256xf32>
    %3 = vector.extract_strided_slice %1 {offsets = [0, 0], sizes = [128, 1], strides = [1, 1]} : vector<128x3xf32> to vector<128x1xf32>
    %4 = vector.extract_strided_slice %2 {offsets = [0, 0], sizes = [1, 256], strides = [1, 1]} : vector<3x256xf32> to vector<1x256xf32>
    %5 = vector.broadcast %3 : vector<128x1xf32> to vector<128x256xf32>
    %6 = vector.broadcast %4 : vector<1x256xf32> to vector<128x256xf32>
    %7 = arith.subf %5, %6 : vector<128x256xf32>
    %8 = arith.mulf %7, %7 : vector<128x256xf32>
    %9 = vector.extract_strided_slice %1 {offsets = [0, 1], sizes = [128, 1], strides = [1, 1]} : vector<128x3xf32> to vector<128x1xf32>
    %10 = vector.extract_strided_slice %2 {offsets = [1, 0], sizes = [1, 256], strides = [1, 1]} : vector<3x256xf32> to vector<1x256xf32>
    %11 = vector.broadcast %9 : vector<128x1xf32> to vector<128x256xf32>
    %12 = vector.broadcast %10 : vector<1x256xf32> to vector<128x256xf32>
    %13 = arith.subf %11, %12 : vector<128x256xf32>
    %14 = arith.mulf %13, %13 : vector<128x256xf32>
    %15 = arith.addf %8, %14 : vector<128x256xf32>
    %16 = vector.extract_strided_slice %1 {offsets = [0, 2], sizes = [128, 1], strides = [1, 1]} : vector<128x3xf32> to vector<128x1xf32>
    %17 = vector.extract_strided_slice %2 {offsets = [2, 0], sizes = [1, 256], strides = [1, 1]} : vector<3x256xf32> to vector<1x256xf32>
    %18 = vector.broadcast %16 : vector<128x1xf32> to vector<128x256xf32>
    %19 = vector.broadcast %17 : vector<1x256xf32> to vector<128x256xf32>
    %20 = arith.subf %18, %19 : vector<128x256xf32>
    %21 = arith.mulf %20, %20 : vector<128x256xf32>
    %22 = arith.addf %15, %21 : vector<128x256xf32>
    %cst = arith.constant 0.000000e+00 : f32
    %23 = vector.broadcast %cst : f32 to vector<128x256xf32>
    %24 = arith.cmpf ogt, %22, %23 : vector<128x256xf32>
    %cst_4 = arith.constant 5.000000e-01 : f32
    %25 = arith.mulf %cst_4, %0 : f32
    %cst_5 = arith.constant 1.000000e-30 : f32
    %26 = vector.broadcast %cst_5 : f32 to vector<128x256xf32>
    %27 = arith.maximumf %22, %26 : vector<128x256xf32>
    %28 = math.log %27 : vector<128x256xf32>
    %29 = vector.broadcast %25 : f32 to vector<128x256xf32>
    %30 = arith.mulf %29, %28 : vector<128x256xf32>
    %31 = math.exp %30 : vector<128x256xf32>
    %cst_6 = arith.constant 0.000000e+00 : f32
    %32 = vector.broadcast %cst_6 : f32 to vector<128x256xf32>
    %33 = arith.select %24, %31, %32 : vector<128x256xi1>, vector<128x256xf32>
    %cst_7 = arith.constant 9.99999997E-7 : f32
    %34 = vector.broadcast %cst_7 : f32 to vector<128x256xf32>
    %35 = arith.addf %33, %34 : vector<128x256xf32>
    %cst_8 = arith.constant 1.000000e+00 : f32
    %36 = vector.broadcast %cst_8 : f32 to vector<128x256xf32>
    %37 = arith.divf %36, %35 : vector<128x256xf32>
    %c0_9 = arith.constant 0 : index
    %c0_10 = arith.constant 0 : index
    %38 = vector.load %arg6[%c0_9, %c0_10] : memref<128x256xf32, #tpu.memory_space<vmem>>, vector<128x256xf32>
    tpu.vector_store %arg6[%c0_9, %c0_10], %37 {strides = array<i32>} : memref<128x256xf32, #tpu.memory_space<vmem>>, vector<128x256xf32>,
    %c0_11 = arith.constant 0 : index
    %c0_12 = arith.constant 0 : index
    %39 = vector.load %arg4[%c0_11, %c0_12] : memref<256x2xf32, #tpu.memory_space<vmem>>, vector<256x2xf32>
    %cst_13 = arith.constant dense<0.000000e+00> : vector<128x2xf32>
    %40 = tpu.matmul %37, %39, %cst_13 {dimension_numbers = #tpu.dot_dimension_numbers<[1], [0], [0], [1], [0, 0, 1, 1], [], []>} : vector<128x256xf32>, vector<256x2xf32>, vector<128x2xf32> -> vector<128x2xf32>
    %41 = vector.extract_strided_slice %40 {offsets = [0, 0], sizes = [128, 1], strides = [1, 1]} : vector<128x2xf32> to vector<128x1xf32>
    %42 = vector.extract_strided_slice %40 {offsets = [0, 1], sizes = [128, 1], strides = [1, 1]} : vector<128x2xf32> to vector<128x1xf32>
    %43 = arith.divf %41, %42 : vector<128x1xf32>
    %c0_14 = arith.constant 0 : index
    %c0_15 = arith.constant 0 : index
    %44 = vector.load %arg5[%c0_14, %c0_15] : memref<128x1xf32, #tpu.memory_space<vmem>>, vector<128x1xf32>
    tpu.vector_store %arg5[%c0_14, %c0_15], %43 {strides = array<i32>} : memref<128x1xf32, #tpu.memory_space<vmem>>, vector<128x1xf32>,
    return
  }
  func.func @transform_0(%arg0: i32) -> i32 {
    %c0_i32 = arith.constant 0 : i32
    %c0_i32_0 = arith.constant 0 : i32
    return %c0_i32 : i32
  }
  func.func @transform_1(%arg0: i32) -> (i32, i32) {
    %c0_i32 = arith.constant 0 : i32
    %c0_i32_0 = arith.constant 0 : i32
    return %arg0, %c0_i32 : i32, i32
  }
  func.func @transform_2(%arg0: i32) -> (i32, i32) {
    %c0_i32 = arith.constant 0 : i32
    %c0_i32_0 = arith.constant 0 : i32
    %c0_i32_1 = arith.constant 0 : i32
    return %c0_i32, %c0_i32_0 : i32, i32
  }
  func.func @transform_3(%arg0: i32) -> (i32, i32) {
    %c0_i32 = arith.constant 0 : i32
    %c0_i32_0 = arith.constant 0 : i32
    %c0_i32_1 = arith.constant 0 : i32
    return %c0_i32, %c0_i32_0 : i32, i32
  }
  func.func @transform_4(%arg0: i32) -> (i32, i32) {
    %c0_i32 = arith.constant 0 : i32
    %c0_i32_0 = arith.constant 0 : i32
    return %arg0, %c0_i32 : i32, i32
  }
  func.func @transform_5(%arg0: i32) -> (i32, i32) {
    %c0_i32 = arith.constant 0 : i32
    %c0_i32_0 = arith.constant 0 : i32
    return %arg0, %c0_i32 : i32, i32
  }
}

</mosaic_0001>

<llo_original>
// kernel: tpu_custom_call.1
$region0: #{tpu_custom_call.1}
  #allocation0 [shape = 'u32[]', space=smem, size = 0x4, offset = 0x4, fixed_abs, tag = 'smem constant byte address 0x4 - core index']
  #allocation1 [shape = 'u32[144,128]{1,0:T(1,128)}', space=vmem, size = 0x12000, scoped, tag = 'internal scratch']
  #allocation2 [shape = 'f32[1]{0:T(128)S(6)}', space=smem, size = 0x200, scoped, tag = 'scoped memory for tpu_custom_call.1']
  %s0 = inlined_call_operand.<no memory space> [shape: f32[1], index: 0, kind: input, shape index: {}]
  %s1 = inlined_call_operand.vmem [shape: f32[256,3], index: 1, kind: input, shape index: {}]
  %s2 = inlined_call_operand.vmem [shape: f32[3,256], index: 2, kind: input, shape index: {}]
  %s3 = inlined_call_operand.vmem [shape: f32[256,2], index: 3, kind: input, shape index: {}]
  %s4 = inlined_call_operand.vmem [shape: f32[256,1], index: 4, kind: output, shape index: {0}]
  %s5 = inlined_call_operand.hbm [shape: f32[256,256], index: 5, kind: output, shape index: {1}]
  %6 = xla_tuple %s4, %s5
  %s7 = sld [smem:[#allocation0]]
  $region57: #{tpu_custom_call.1} parent=0
    _
  %s9 = ssub.s32 1, %s7
  %s10 = scalar_select 0, %s9, %s7
  %11 = sst [smem:[#allocation2]] %s0
  $region1: #{tpu_custom_call.1} parent=0
    #allocation3 [shape = 'u8[262144]{0}', space=vmem, size = 0x40000, scoped, tag = 'output window, operand 1']
    #allocation4 [shape = 's32[2]{0}', space=sflag, size = 0x8, scoped, tag = 'scoped memory for tpu_custom_call.1']
    %12 = vsyncpa [#allocation4], 0
    %s13 = scalar_lea.sflag [#allocation4], 1
    %14 = vsyncpa %s13, 0
    loop: start=0, step=1, limit=4
    $region2: #{tpu_custom_call.1} parent=1 // loop_pre_header
      _
    $region3: #{tpu_custom_call.1} parent=1 // loop_header
      %s16 = sphi 0, %s20
      %p17 = scmp.ge.s32.totalorder %s16, 4
      %s24 = sphi 0, %s24
      %s26 = sphi 0, %s24
      %s27 = sphi 0, %s26
      %s41 = sphi 0, %s27
      %s47 = sphi 0, %s49
      %s50 = sphi 0, %s47
      %s51 = sphi 0, %s50
      %s67 = sphi 0, %s51
      %s71 = sphi 0, %s71
      %s73 = sphi 0, %s71
      %s74 = sphi 0, %s73
      %s88 = sphi 0, %s74
      %s92 = sphi 0, %s92
      %s94 = sphi 0, %s92
      %s95 = sphi 0, %s94
      %s109 = sphi 0, %s95
      %s115 = sphi 0, %s117
      %s118 = sphi 0, %s115
      %s119 = sphi 0, %s118
      %s135 = sphi 0, %s119
      %s141 = sphi 0, %s143
      %s144 = sphi 0, %s141
      %s145 = sphi 0, %s144
      %s161 = sphi 0, %s145
    $region4: #{tpu_custom_call.1} parent=1 // loop_header_branch
      %19 = sbr.rel (%p17) target = $region8
    $region5: #{tpu_custom_call.1} parent=1 // loop_body
      %s21 = ssub.s32 %s16, 1
      %s22 = ssub.s32 %s16, 2
      %s23 = sadd.s32 %s16, 1
      %s25 = sadd.s32 %s24, 1
      %p28 = scmp.eq.s32.totalorder %s16, 1
      %p29 = scmp.ne.s32.totalorder %s24, %s26
      %p30 = scmp.eq.s32.totalorder %s16, 0
      %p31 = por %p29, %p30
      %p32 = scmp.ne.s32.totalorder %s24, %s26
      %p33 = scmp.eq.s32.totalorder %s21, 1
      %p34 = por %p32, %p33
      %p35 = scmp.ne.s32.totalorder %s26, %s27
      %p36 = scmp.eq.s32.totalorder %s21, 0
      %p37 = por %p35, %p36
      %p38 = scmp.ne.s32.totalorder %s26, %s27
      %p39 = scmp.eq.s32.totalorder %s22, 1
      %p40 = por %p38, %p39
      %p42 = scmp.ne.s32.totalorder %s27, %s41
      %p43 = scmp.eq.s32.totalorder %s22, 0
      %p44 = por %p42, %p43
      %s45 = ssub.s32 %s16, %s23
      %p46 = scmp.eq.s32.totalorder %s45, 0
      %s48 = sadd.s32 %s47, 1
      %s49 = scalar_select %p46, %s47, %s48
      %p52 = pneg %p46
      %p53 = scmp.eq.s32.totalorder %s16, 1
      %p54 = por %p52, %p53
      %p55 = scmp.ne.s32.totalorder %s47, %s50
      %p56 = scmp.eq.s32.totalorder %s16, 0
      %p57 = por %p55, %p56
      %p58 = scmp.ne.s32.totalorder %s47, %s50
      %p59 = scmp.eq.s32.totalorder %s21, 1
      %p60 = por %p58, %p59
      %p61 = scmp.ne.s32.totalorder %s50, %s51
      %p62 = scmp.eq.s32.totalorder %s21, 0
      %p63 = por %p61, %p62
      %p64 = scmp.ne.s32.totalorder %s50, %s51
      %p65 = scmp.eq.s32.totalorder %s22, 1
      %p66 = por %p64, %p65
      %p68 = scmp.ne.s32.totalorder %s51, %s67
      %p69 = scmp.eq.s32.totalorder %s22, 0
      %p70 = por %p68, %p69
      %s72 = sadd.s32 %s71, 1
      %p75 = scmp.eq.s32.totalorder %s16, 1
      %p76 = scmp.ne.s32.totalorder %s71, %s73
      %p77 = scmp.eq.s32.totalorder %s16, 0
      %p78 = por %p76, %p77
      %p79 = scmp.ne.s32.totalorder %s71, %s73
      %p80 = scmp.eq.s32.totalorder %s21, 1
      %p81 = por %p79, %p80
      %p82 = scmp.ne.s32.totalorder %s73, %s74
      %p83 = scmp.eq.s32.totalorder %s21, 0
      %p84 = por %p82, %p83
      %p85 = scmp.ne.s32.totalorder %s73, %s74
      %p86 = scmp.eq.s32.totalorder %s22, 1
      %p87 = por %p85, %p86
      %p89 = scmp.ne.s32.totalorder %s74, %s88
      %p90 = scmp.eq.s32.totalorder %s22, 0
      %p91 = por %p89, %p90
      %s93 = sadd.s32 %s92, 1
      %p96 = scmp.eq.s32.totalorder %s16, 1
      %p97 = scmp.ne.s32.totalorder %s92, %s94
      %p98 = scmp.eq.s32.totalorder %s16, 0
      %p99 = por %p97, %p98
      %p100 = scmp.ne.s32.totalorder %s92, %s94
      %p101 = scmp.eq.s32.totalorder %s21, 1
      %p102 = por %p100, %p101
      %p103 = scmp.ne.s32.totalorder %s94, %s95
      %p104 = scmp.eq.s32.totalorder %s21, 0
      %p105 = por %p103, %p104
      %p106 = scmp.ne.s32.totalorder %s94, %s95
      %p107 = scmp.eq.s32.totalorder %s22, 1
      %p108 = por %p106, %p107
      %p110 = scmp.ne.s32.totalorder %s95, %s109
      %p111 = scmp.eq.s32.totalorder %s22, 0
      %p112 = por %p110, %p111
      %s113 = ssub.s32 %s16, %s23
      %p114 = scmp.eq.s32.totalorder %s113, 0
      %s116 = sadd.s32 %s115, 1
      %s117 = scalar_select %p114, %s115, %s116
      %p120 = pneg %p114
      %p121 = scmp.eq.s32.totalorder %s16, 1
      %p122 = por %p120, %p121
      %p123 = scmp.ne.s32.totalorder %s115, %s118
      %p124 = scmp.eq.s32.totalorder %s16, 0
      %p125 = por %p123, %p124
      %p126 = scmp.ne.s32.totalorder %s115, %s118
      %p127 = scmp.eq.s32.totalorder %s21, 1
      %p128 = por %p126, %p127
      %p129 = scmp.ne.s32.totalorder %s118, %s119
      %p130 = scmp.eq.s32.totalorder %s21, 0
      %p131 = por %p129, %p130
      %p132 = scmp.ne.s32.totalorder %s118, %s119
      %p133 = scmp.eq.s32.totalorder %s22, 1
      %p134 = por %p132, %p133
      %p136 = scmp.ne.s32.totalorder %s119, %s135
      %p137 = scmp.eq.s32.totalorder %s22, 0
      %p138 = por %p136, %p137
      %s139 = ssub.s32 %s16, %s23
      %p140 = scmp.eq.s32.totalorder %s139, 0
      %s142 = sadd.s32 %s141, 1
      %s143 = scalar_select %p140, %s141, %s142
      %p146 = pneg %p140
      %p147 = scmp.eq.s32.totalorder %s16, 1
      %p148 = por %p146, %p147
      %p149 = scmp.ne.s32.totalorder %s141, %s144
      %p150 = scmp.eq.s32.totalorder %s16, 0
      %p151 = por %p149, %p150
      %p152 = scmp.ne.s32.totalorder %s141, %s144
      %p153 = scmp.eq.s32.totalorder %s21, 1
      %p154 = por %p152, %p153
      %p155 = scmp.ne.s32.totalorder %s144, %s145
      %p156 = scmp.eq.s32.totalorder %s21, 0
      %p157 = por %p155, %p156
      %p158 = scmp.ne.s32.totalorder %s144, %s145
      %p159 = scmp.eq.s32.totalorder %s22, 1
      %p160 = por %p158, %p159
      %p162 = scmp.ne.s32.totalorder %s145, %s161
      %p163 = scmp.eq.s32.totalorder %s22, 0
      %p164 = por %p162, %p163
      %p165 = scmp.le.s32.totalorder 1, %s16
      %p166 = scmp.lt.s32.totalorder %s16, 3
      %p167 = pnand %p165, %p166
      %p168 = pneg %p167
      // Predicated region
      $region9: #{tpu_custom_call.1} parent=5 // pred_check
        _
      $region10: #{tpu_custom_call.1} parent=5 // pred_check_branch
        %170 = sbr.rel (%p167) target = $region12
      $region11: #{tpu_custom_call.1} parent=5 // pred_region
        %s171 = ssub.s32 %s16, 1
        // Predicated region
        $region13: #{tpu_custom_call.1} parent=11 // pred_check
          %p172 = pneg %p37
        $region14: #{tpu_custom_call.1} parent=11 // pred_check_branch
          %174 = sbr.rel (%p172) target = $region16
        $region15: #{tpu_custom_call.1} parent=11 // pred_region
          _
        $region16: #{tpu_custom_call.1} parent=11 // pred_fallthru
          _
        // Predicated region
        $region17: #{tpu_custom_call.1} parent=11 // pred_check
          %p175 = pneg %p84
        $region18: #{tpu_custom_call.1} parent=11 // pred_check_branch
          %177 = sbr.rel (%p175) target = $region20
        $region19: #{tpu_custom_call.1} parent=11 // pred_region
          _
        $region20: #{tpu_custom_call.1} parent=11 // pred_fallthru
          _
        // Predicated region
        $region21: #{tpu_custom_call.1} parent=11 // pred_check
          %p178 = pneg %p105
        $region22: #{tpu_custom_call.1} parent=11 // pred_check_branch
          %180 = sbr.rel (%p178) target = $region24
        $region23: #{tpu_custom_call.1} parent=11 // pred_region
          _
        $region24: #{tpu_custom_call.1} parent=11 // pred_fallthru
          _
      $region12: #{tpu_custom_call.1} parent=5 // pred_fallthru
        _
      %p181 = scmp.lt.s32.totalorder %s16, 2
      // Predicated region
      $region25: #{tpu_custom_call.1} parent=5 // pred_check
        %p182 = pneg %p181
      $region26: #{tpu_custom_call.1} parent=5 // pred_check_branch
        %184 = sbr.rel (%p182) target = $region28
      $region27: #{tpu_custom_call.1} parent=5 // pred_region
        // Predicated region
        $region29: #{tpu_custom_call.1} parent=27 // pred_check
          %p185 = pneg %p57
        $region30: #{tpu_custom_call.1} parent=27 // pred_check_branch
          %187 = sbr.rel (%p185) target = $region32
        $region31: #{tpu_custom_call.1} parent=27 // pred_region
          %s188 = smul.u32 16, %s16
          %p189 = scmp.lt.s32.totalorder %s188, 31
          %s190 = scalar_select %p189, %s188, 31
          %s191 = smul.addr %s190, 8
          %s192 = scalar_lea.vmem %s1, %s191
          %s193 = smul.u32 16, %s16
        $region32: #{tpu_custom_call.1} parent=27 // pred_fallthru
          _
      $region28: #{tpu_custom_call.1} parent=5 // pred_fallthru
        _
      %p194 = scmp.le.s32.totalorder 1, %s16
      %p195 = scmp.lt.s32.totalorder %s16, 3
      %p196 = pnand %p194, %p195
      %p197 = pneg %p196
      // Predicated region
      $region33: #{tpu_custom_call.1} parent=5 // pred_check
        _
      $region34: #{tpu_custom_call.1} parent=5 // pred_check_branch
        %199 = sbr.rel (%p196) target = $region36
      $region35: #{tpu_custom_call.1} parent=5 // pred_region
        %s200 = ssub.s32 %s16, 1
        %p201 = pneg %p37
        %p202 = pneg %p34
        %s203 = smul.u32 16, %s21
        %p204 = scmp.lt.s32.totalorder %s203, 31
        %s205 = scalar_select %p204, %s203, 31
        %s206 = smul.addr %s205, 8
        %s207 = scalar_lea.vmem %s1, %s206
        %p208 = pneg %p63
        %p209 = pneg %p60
        %p210 = pneg %p84
        %p211 = pneg %p81
        %p212 = pneg %p105
        %p213 = pneg %p102
        %p214 = pneg %p131
        %p215 = pneg %p128
        %s216 = smul.u32 16, %s21
        %p217 = scmp.lt.s32.totalorder %s216, 31
        %s218 = scalar_select %p217, %s216, 31
        %s219 = smul.addr %s218, 8
        %s220 = scalar_lea.vmem %s4, %s219
        %p221 = pneg %p157
        %p222 = pneg %p154
        %s223 = sand.u32 %s144, 1
        %s224 = scalar_lea.sflag [#allocation4], %s223
        %s225 = sand.u32 %s144, 1
        %s226 = smul.addr %s225, 256
        %s227 = scalar_lea.vmem [#allocation3], %s226
        %s228 = smul.u32 16, %s21
        %p229 = scmp.lt.s32.totalorder %s228, 31
        %s230 = scalar_select %p229, %s228, 31
        %s231 = smul.addr %s230, 8
        %s232 = scalar_lea.vmem %s1, %s231
        %s233 = smul.u32 16, %s21
        %s234 = smul.u32 16, %s21
        %p235 = scmp.lt.s32.totalorder %s234, 31
        %s236 = scalar_select %p235, %s234, 31
        %s237 = smul.addr %s236, 8
        %s238 = scalar_lea.vmem %s4, %s237
        %s239 = smul.u32 16, %s21
        %s240 = smul.u32 16, %s21
        %s241 = sld [smem:[#allocation2]]
        %v242 = vld [vmem:[%s232] sm:$0xff]
        %v243 = vld [vmem:[%s232 + $0x8] sm:$0xff]
        %v244 = vld [vmem:[%s232 + $0x10] sm:$0xff]
        %v245 = vld [vmem:[%s232 + $0x18] sm:$0xff]
        %v246 = vld [vmem:[%s232 + $0x20] sm:$0xff]
        %v247 = vld [vmem:[%s232 + $0x28] sm:$0xff]
        %v248 = vld [vmem:[%s232 + $0x30] sm:$0xff]
        %v249 = vld [vmem:[%s232 + $0x38] sm:$0xff]
        %v250 = vld [vmem:[%s232 + $0x40] sm:$0xff]
        %v251 = vld [vmem:[%s232 + $0x48] sm:$0xff]
        %v252 = vld [vmem:[%s232 + $0x50] sm:$0xff]
        %v253 = vld [vmem:[%s232 + $0x58] sm:$0xff]
        %v254 = vld [vmem:[%s232 + $0x60] sm:$0xff]
        %v255 = vld [vmem:[%s232 + $0x68] sm:$0xff]
        %v256 = vld [vmem:[%s232 + $0x70] sm:$0xff]
        %v257 = vld [vmem:[%s232 + $0x78] sm:$0xff]
        %v258 = vld [vmem:[%s2] sm:$0x77]
        %260 = vset.pattern.permute.xlu0 0
        %261 = vperm.xlu0 %260, %v242
        %v262 = vpop.permute.xlu0 %261
        %265 = vset.pattern.permute.xlu0 0
        %266 = vperm.xlu0 %265, %v243
        %v267 = vpop.permute.xlu0 %266
        %270 = vset.pattern.permute.xlu0 0
        %271 = vperm.xlu0 %270, %v244
        %v272 = vpop.permute.xlu0 %271
        %275 = vset.pattern.permute.xlu0 0
        %276 = vperm.xlu0 %275, %v245
        %v277 = vpop.permute.xlu0 %276
        %280 = vset.pattern.permute.xlu0 0
        %281 = vperm.xlu0 %280, %v246
        %v282 = vpop.permute.xlu0 %281
        %285 = vset.pattern.permute.xlu0 0
        %286 = vperm.xlu0 %285, %v247
        %v287 = vpop.permute.xlu0 %286
        %290 = vset.pattern.permute.xlu0 0
        %291 = vperm.xlu0 %290, %v248
        %v292 = vpop.permute.xlu0 %291
        %295 = vset.pattern.permute.xlu0 0
        %296 = vperm.xlu0 %295, %v249
        %v297 = vpop.permute.xlu0 %296
        %300 = vset.pattern.permute.xlu0 0
        %301 = vperm.xlu0 %300, %v250
        %v302 = vpop.permute.xlu0 %301
        %305 = vset.pattern.permute.xlu0 0
        %306 = vperm.xlu0 %305, %v251
        %v307 = vpop.permute.xlu0 %306
        %310 = vset.pattern.permute.xlu0 0
        %311 = vperm.xlu0 %310, %v252
        %v312 = vpop.permute.xlu0 %311
        %315 = vset.pattern.permute.xlu0 0
        %316 = vperm.xlu0 %315, %v253
        %v317 = vpop.permute.xlu0 %316
        %320 = vset.pattern.permute.xlu0 0
        %321 = vperm.xlu0 %320, %v254
        %v322 = vpop.permute.xlu0 %321
        %325 = vset.pattern.permute.xlu0 0
        %326 = vperm.xlu0 %325, %v255
        %v327 = vpop.permute.xlu0 %326
        %330 = vset.pattern.permute.xlu0 0
        %331 = vperm.xlu0 %330, %v256
        %v332 = vpop.permute.xlu0 %331
        %335 = vset.pattern.permute.xlu0 0
        %336 = vperm.xlu0 %335, %v257
        %v337 = vpop.permute.xlu0 %336
        %v340 = vlaneseq
        %v341 = vshrl.u32 %v340, 7
        %v342 = vsub.s32 0, %v341
        %v343 = vrot.slane %v258, %v342
        %v344 = vlaneseq
        %v345 = vshrl.u32 %v344, 7
        %v346 = vsub.s32 4, %v345
        %v347 = vrot.slane %v258, %v346
        %v350 = vlaneseq
        %v351 = vshrl.u32 %v350, 7
        %v352 = vsub.s32 0, %v351
        %v353 = vrot.slane %v343, %v352
        %v354 = vlaneseq
        %v355 = vshrl.u32 %v354, 7
        %v356 = vsub.s32 0, %v355
        %v357 = vrot.slane %v347, %v356
        %v358 = vsub.f32 %v262, %v353
        %v359 = vsub.f32 %v262, %v357
        %v360 = vsub.f32 %v267, %v353
        %v361 = vsub.f32 %v267, %v357
        %v362 = vsub.f32 %v272, %v353
        %v363 = vsub.f32 %v272, %v357
        %v364 = vsub.f32 %v277, %v353
        %v365 = vsub.f32 %v277, %v357
        %v366 = vsub.f32 %v282, %v353
        %v367 = vsub.f32 %v282, %v357
        %v368 = vsub.f32 %v287, %v353
        %v369 = vsub.f32 %v287, %v357
        %v370 = vsub.f32 %v292, %v353
        %v371 = vsub.f32 %v292, %v357
        %v372 = vsub.f32 %v297, %v353
        %v373 = vsub.f32 %v297, %v357
        %v374 = vsub.f32 %v302, %v353
        %v375 = vsub.f32 %v302, %v357
        %v376 = vsub.f32 %v307, %v353
        %v377 = vsub.f32 %v307, %v357
        %v378 = vsub.f32 %v312, %v353
        %v379 = vsub.f32 %v312, %v357
        %v380 = vsub.f32 %v317, %v353
        %v381 = vsub.f32 %v317, %v357
        %v382 = vsub.f32 %v322, %v353
        %v383 = vsub.f32 %v322, %v357
        %v384 = vsub.f32 %v327, %v353
        %v385 = vsub.f32 %v327, %v357
        %v386 = vsub.f32 %v332, %v353
        %v387 = vsub.f32 %v332, %v357
        %v388 = vsub.f32 %v337, %v353
        %v389 = vsub.f32 %v337, %v357
        %v390 = vmul.f32 %v358, %v358
        %v391 = vmul.f32 %v359, %v359
        %v392 = vmul.f32 %v360, %v360
        %v393 = vmul.f32 %v361, %v361
        %v394 = vmul.f32 %v362, %v362
        %v395 = vmul.f32 %v363, %v363
        %v396 = vmul.f32 %v364, %v364
        %v397 = vmul.f32 %v365, %v365
        %v398 = vmul.f32 %v366, %v366
        %v399 = vmul.f32 %v367, %v367
        %v400 = vmul.f32 %v368, %v368
        %v401 = vmul.f32 %v369, %v369
        %v402 = vmul.f32 %v370, %v370
        %v403 = vmul.f32 %v371, %v371
        %v404 = vmul.f32 %v372, %v372
        %v405 = vmul.f32 %v373, %v373
        %v406 = vmul.f32 %v374, %v374
        %v407 = vmul.f32 %v375, %v375
        %v408 = vmul.f32 %v376, %v376
        %v409 = vmul.f32 %v377, %v377
        %v410 = vmul.f32 %v378, %v378
        %v411 = vmul.f32 %v379, %v379
        %v412 = vmul.f32 %v380, %v380
        %v413 = vmul.f32 %v381, %v381
        %v414 = vmul.f32 %v382, %v382
        %v415 = vmul.f32 %v383, %v383
        %v416 = vmul.f32 %v384, %v384
        %v417 = vmul.f32 %v385, %v385
        %v418 = vmul.f32 %v386, %v386
        %v419 = vmul.f32 %v387, %v387
        %v420 = vmul.f32 %v388, %v388
        %v421 = vmul.f32 %v389, %v389
        %422 = vset.pattern.permute.xlu0 1
        %423 = vperm.xlu0 %422, %v242
        %v424 = vpop.permute.xlu0 %423
        %426 = vset.pattern.permute.xlu0 1
        %427 = vperm.xlu0 %426, %v243
        %v428 = vpop.permute.xlu0 %427
        %430 = vset.pattern.permute.xlu0 1
        %431 = vperm.xlu0 %430, %v244
        %v432 = vpop.permute.xlu0 %431
        %434 = vset.pattern.permute.xlu0 1
        %435 = vperm.xlu0 %434, %v245
        %v436 = vpop.permute.xlu0 %435
        %438 = vset.pattern.permute.xlu0 1
        %439 = vperm.xlu0 %438, %v246
        %v440 = vpop.permute.xlu0 %439
        %442 = vset.pattern.permute.xlu0 1
        %443 = vperm.xlu0 %442, %v247
        %v444 = vpop.permute.xlu0 %443
        %446 = vset.pattern.permute.xlu0 1
        %447 = vperm.xlu0 %446, %v248
        %v448 = vpop.permute.xlu0 %447
        %450 = vset.pattern.permute.xlu0 1
        %451 = vperm.xlu0 %450, %v249
        %v452 = vpop.permute.xlu0 %451
        %454 = vset.pattern.permute.xlu0 1
        %455 = vperm.xlu0 %454, %v250
        %v456 = vpop.permute.xlu0 %455
        %458 = vset.pattern.permute.xlu0 1
        %459 = vperm.xlu0 %458, %v251
        %v460 = vpop.permute.xlu0 %459
        %462 = vset.pattern.permute.xlu0 1
        %463 = vperm.xlu0 %462, %v252
        %v464 = vpop.permute.xlu0 %463
        %466 = vset.pattern.permute.xlu0 1
        %467 = vperm.xlu0 %466, %v253
        %v468 = vpop.permute.xlu0 %467
        %470 = vset.pattern.permute.xlu0 1
        %471 = vperm.xlu0 %470, %v254
        %v472 = vpop.permute.xlu0 %471
        %474 = vset.pattern.permute.xlu0 1
        %475 = vperm.xlu0 %474, %v255
        %v476 = vpop.permute.xlu0 %475
        %478 = vset.pattern.permute.xlu0 1
        %479 = vperm.xlu0 %478, %v256
        %v480 = vpop.permute.xlu0 %479
        %482 = vset.pattern.permute.xlu0 1
        %483 = vperm.xlu0 %482, %v257
        %v484 = vpop.permute.xlu0 %483
        %v486 = vlaneseq
        %v487 = vshrl.u32 %v486, 7
        %v488 = vsub.s32 1, %v487
        %v489 = vrot.slane %v258, %v488
        %v490 = vlaneseq
        %v491 = vshrl.u32 %v490, 7
        %v492 = vsub.s32 5, %v491
        %v493 = vrot.slane %v258, %v492
        %v496 = vlaneseq
        %v497 = vshrl.u32 %v496, 7
        %v498 = vsub.s32 1, %v497
        %v499 = vrot.slane %v489, %v498
        %v500 = vlaneseq
        %v501 = vshrl.u32 %v500, 7
        %v502 = vsub.s32 1, %v501
        %v503 = vrot.slane %v493, %v502
        %v504 = vsub.f32 %v424, %v499
        %v505 = vsub.f32 %v424, %v503
        %v506 = vsub.f32 %v428, %v499
        %v507 = vsub.f32 %v428, %v503
        %v508 = vsub.f32 %v432, %v499
        %v509 = vsub.f32 %v432, %v503
        %v510 = vsub.f32 %v436, %v499
        %v511 = vsub.f32 %v436, %v503
        %v512 = vsub.f32 %v440, %v499
        %v513 = vsub.f32 %v440, %v503
        %v514 = vsub.f32 %v444, %v499
        %v515 = vsub.f32 %v444, %v503
        %v516 = vsub.f32 %v448, %v499
        %v517 = vsub.f32 %v448, %v503
        %v518 = vsub.f32 %v452, %v499
        %v519 = vsub.f32 %v452, %v503
        %v520 = vsub.f32 %v456, %v499
        %v521 = vsub.f32 %v456, %v503
        %v522 = vsub.f32 %v460, %v499
        %v523 = vsub.f32 %v460, %v503
        %v524 = vsub.f32 %v464, %v499
        %v525 = vsub.f32 %v464, %v503
        %v526 = vsub.f32 %v468, %v499
        %v527 = vsub.f32 %v468, %v503
        %v528 = vsub.f32 %v472, %v499
        %v529 = vsub.f32 %v472, %v503
        %v530 = vsub.f32 %v476, %v499
        %v531 = vsub.f32 %v476, %v503
        %v532 = vsub.f32 %v480, %v499
        %v533 = vsub.f32 %v480, %v503
        %v534 = vsub.f32 %v484, %v499
        %v535 = vsub.f32 %v484, %v503
        %v536 = vmul.f32 %v504, %v504
        %v537 = vmul.f32 %v505, %v505
        %v538 = vmul.f32 %v506, %v506
        %v539 = vmul.f32 %v507, %v507
        %v540 = vmul.f32 %v508, %v508
        %v541 = vmul.f32 %v509, %v509
        %v542 = vmul.f32 %v510, %v510
        %v543 = vmul.f32 %v511, %v511
        %v544 = vmul.f32 %v512, %v512
        %v545 = vmul.f32 %v513, %v513
        %v546 = vmul.f32 %v514, %v514
        %v547 = vmul.f32 %v515, %v515
        %v548 = vmul.f32 %v516, %v516
        %v549 = vmul.f32 %v517, %v517
        %v550 = vmul.f32 %v518, %v518
        %v551 = vmul.f32 %v519, %v519
        %v552 = vmul.f32 %v520, %v520
        %v553 = vmul.f32 %v521, %v521
        %v554 = vmul.f32 %v522, %v522
        %v555 = vmul.f32 %v523, %v523
        %v556 = vmul.f32 %v524, %v524
        %v557 = vmul.f32 %v525, %v525
        %v558 = vmul.f32 %v526, %v526
        %v559 = vmul.f32 %v527, %v527
        %v560 = vmul.f32 %v528, %v528
        %v561 = vmul.f32 %v529, %v529
        %v562 = vmul.f32 %v530, %v530
        %v563 = vmul.f32 %v531, %v531
        %v564 = vmul.f32 %v532, %v532
        %v565 = vmul.f32 %v533, %v533
        %v566 = vmul.f32 %v534, %v534
        %v567 = vmul.f32 %v535, %v535
        %v568 = vadd.f32 %v390, %v536
        %v569 = vadd.f32 %v391, %v537
        %v570 = vadd.f32 %v392, %v538
        %v571 = vadd.f32 %v393, %v539
        %v572 = vadd.f32 %v394, %v540
        %v573 = vadd.f32 %v395, %v541
        %v574 = vadd.f32 %v396, %v542
        %v575 = vadd.f32 %v397, %v543
        %v576 = vadd.f32 %v398, %v544
        %v577 = vadd.f32 %v399, %v545
        %v578 = vadd.f32 %v400, %v546
        %v579 = vadd.f32 %v401, %v547
        %v580 = vadd.f32 %v402, %v548
        %v581 = vadd.f32 %v403, %v549
        %v582 = vadd.f32 %v404, %v550
        %v583 = vadd.f32 %v405, %v551
        %v584 = vadd.f32 %v406, %v552
        %v585 = vadd.f32 %v407, %v553
        %v586 = vadd.f32 %v408, %v554
        %v587 = vadd.f32 %v409, %v555
        %v588 = vadd.f32 %v410, %v556
        %v589 = vadd.f32 %v411, %v557
        %v590 = vadd.f32 %v412, %v558
        %v591 = vadd.f32 %v413, %v559
        %v592 = vadd.f32 %v414, %v560
        %v593 = vadd.f32 %v415, %v561
        %v594 = vadd.f32 %v416, %v562
        %v595 = vadd.f32 %v417, %v563
        %v596 = vadd.f32 %v418, %v564
        %v597 = vadd.f32 %v419, %v565
        %v598 = vadd.f32 %v420, %v566
        %v599 = vadd.f32 %v421, %v567
        %600 = vset.pattern.permute.xlu0 2
        %601 = vperm.xlu0 %600, %v242
        %v602 = vpop.permute.xlu0 %601
        %604 = vset.pattern.permute.xlu0 2
        %605 = vperm.xlu0 %604, %v243
        %v606 = vpop.permute.xlu0 %605
        %608 = vset.pattern.permute.xlu0 2
        %609 = vperm.xlu0 %608, %v244
        %v610 = vpop.permute.xlu0 %609
        %612 = vset.pattern.permute.xlu0 2
        %613 = vperm.xlu0 %612, %v245
        %v614 = vpop.permute.xlu0 %613
        %616 = vset.pattern.permute.xlu0 2
        %617 = vperm.xlu0 %616, %v246
        %v618 = vpop.permute.xlu0 %617
        %620 = vset.pattern.permute.xlu0 2
        %621 = vperm.xlu0 %620, %v247
        %v622 = vpop.permute.xlu0 %621
        %624 = vset.pattern.permute.xlu0 2
        %625 = vperm.xlu0 %624, %v248
        %v626 = vpop.permute.xlu0 %625
        %628 = vset.pattern.permute.xlu0 2
        %629 = vperm.xlu0 %628, %v249
        %v630 = vpop.permute.xlu0 %629
        %632 = vset.pattern.permute.xlu0 2
        %633 = vperm.xlu0 %632, %v250
        %v634 = vpop.permute.xlu0 %633
        %636 = vset.pattern.permute.xlu0 2
        %637 = vperm.xlu0 %636, %v251
        %v638 = vpop.permute.xlu0 %637
        %640 = vset.pattern.permute.xlu0 2
        %641 = vperm.xlu0 %640, %v252
        %v642 = vpop.permute.xlu0 %641
        %644 = vset.pattern.permute.xlu0 2
        %645 = vperm.xlu0 %644, %v253
        %v646 = vpop.permute.xlu0 %645
        %648 = vset.pattern.permute.xlu0 2
        %649 = vperm.xlu0 %648, %v254
        %v650 = vpop.permute.xlu0 %649
        %652 = vset.pattern.permute.xlu0 2
        %653 = vperm.xlu0 %652, %v255
        %v654 = vpop.permute.xlu0 %653
        %656 = vset.pattern.permute.xlu0 2
        %657 = vperm.xlu0 %656, %v256
        %v658 = vpop.permute.xlu0 %657
        %660 = vset.pattern.permute.xlu0 2
        %661 = vperm.xlu0 %660, %v257
        %v662 = vpop.permute.xlu0 %661
        %v664 = vlaneseq
        %v665 = vshrl.u32 %v664, 7
        %v666 = vsub.s32 2, %v665
        %v667 = vrot.slane %v258, %v666
        %v668 = vlaneseq
        %v669 = vshrl.u32 %v668, 7
        %v670 = vsub.s32 6, %v669
        %v671 = vrot.slane %v258, %v670
        %v674 = vlaneseq
        %v675 = vshrl.u32 %v674, 7
        %v676 = vsub.s32 2, %v675
        %v677 = vrot.slane %v667, %v676
        %v678 = vlaneseq
        %v679 = vshrl.u32 %v678, 7
        %v680 = vsub.s32 2, %v679
        %v681 = vrot.slane %v671, %v680
        %v682 = vsub.f32 %v602, %v677
        %v683 = vsub.f32 %v602, %v681
        %v684 = vsub.f32 %v606, %v677
        %v685 = vsub.f32 %v606, %v681
        %v686 = vsub.f32 %v610, %v677
        %v687 = vsub.f32 %v610, %v681
        %v688 = vsub.f32 %v614, %v677
        %v689 = vsub.f32 %v614, %v681
        %v690 = vsub.f32 %v618, %v677
        %v691 = vsub.f32 %v618, %v681
        %v692 = vsub.f32 %v622, %v677
        %v693 = vsub.f32 %v622, %v681
        %v694 = vsub.f32 %v626, %v677
        %v695 = vsub.f32 %v626, %v681
        %v696 = vsub.f32 %v630, %v677
        %v697 = vsub.f32 %v630, %v681
        %v698 = vsub.f32 %v634, %v677
        %v699 = vsub.f32 %v634, %v681
        %v700 = vsub.f32 %v638, %v677
        %v701 = vsub.f32 %v638, %v681
        %v702 = vsub.f32 %v642, %v677
        %v703 = vsub.f32 %v642, %v681
        %v704 = vsub.f32 %v646, %v677
        %v705 = vsub.f32 %v646, %v681
        %v706 = vsub.f32 %v650, %v677
        %v707 = vsub.f32 %v650, %v681
        %v708 = vsub.f32 %v654, %v677
        %v709 = vsub.f32 %v654, %v681
        %v710 = vsub.f32 %v658, %v677
        %v711 = vsub.f32 %v658, %v681
        %v712 = vsub.f32 %v662, %v677
        %v713 = vsub.f32 %v662, %v681
        %v714 = vmul.f32 %v682, %v682
        %v715 = vmul.f32 %v683, %v683
        %v716 = vmul.f32 %v684, %v684
        %v717 = vmul.f32 %v685, %v685
        %v718 = vmul.f32 %v686, %v686
        %v719 = vmul.f32 %v687, %v687
        %v720 = vmul.f32 %v688, %v688
        %v721 = vmul.f32 %v689, %v689
        %v722 = vmul.f32 %v690, %v690
        %v723 = vmul.f32 %v691, %v691
        %v724 = vmul.f32 %v692, %v692
        %v725 = vmul.f32 %v693, %v693
        %v726 = vmul.f32 %v694, %v694
        %v727 = vmul.f32 %v695, %v695
        %v728 = vmul.f32 %v696, %v696
        %v729 = vmul.f32 %v697, %v697
        %v730 = vmul.f32 %v698, %v698
        %v731 = vmul.f32 %v699, %v699
        %v732 = vmul.f32 %v700, %v700
        %v733 = vmul.f32 %v701, %v701
        %v734 = vmul.f32 %v702, %v702
        %v735 = vmul.f32 %v703, %v703
        %v736 = vmul.f32 %v704, %v704
        %v737 = vmul.f32 %v705, %v705
        %v738 = vmul.f32 %v706, %v706
        %v739 = vmul.f32 %v707, %v707
        %v740 = vmul.f32 %v708, %v708
        %v741 = vmul.f32 %v709, %v709
        %v742 = vmul.f32 %v710, %v710
        %v743 = vmul.f32 %v711, %v711
        %v744 = vmul.f32 %v712, %v712
        %v745 = vmul.f32 %v713, %v713
        %v746 = vadd.f32 %v568, %v714
        %v747 = vadd.f32 %v569, %v715
        %v748 = vadd.f32 %v570, %v716
        %v749 = vadd.f32 %v571, %v717
        %v750 = vadd.f32 %v572, %v718
        %v751 = vadd.f32 %v573, %v719
        %v752 = vadd.f32 %v574, %v720
        %v753 = vadd.f32 %v575, %v721
        %v754 = vadd.f32 %v576, %v722
        %v755 = vadd.f32 %v577, %v723
        %v756 = vadd.f32 %v578, %v724
        %v757 = vadd.f32 %v579, %v725
        %v758 = vadd.f32 %v580, %v726
        %v759 = vadd.f32 %v581, %v727
        %v760 = vadd.f32 %v582, %v728
        %v761 = vadd.f32 %v583, %v729
        %v762 = vadd.f32 %v584, %v730
        %v763 = vadd.f32 %v585, %v731
        %v764 = vadd.f32 %v586, %v732
        %v765 = vadd.f32 %v587, %v733
        %v766 = vadd.f32 %v588, %v734
        %v767 = vadd.f32 %v589, %v735
        %v768 = vadd.f32 %v590, %v736
        %v769 = vadd.f32 %v591, %v737
        %v770 = vadd.f32 %v592, %v738
        %v771 = vadd.f32 %v593, %v739
        %v772 = vadd.f32 %v594, %v740
        %v773 = vadd.f32 %v595, %v741
        %v774 = vadd.f32 %v596, %v742
        %v775 = vadd.f32 %v597, %v743
        %v776 = vadd.f32 %v598, %v744
        %v777 = vadd.f32 %v599, %v745
        %vm778 = vcmp.gt.f32.partialorder %v746, 0.0
        %vm779 = vcmp.gt.f32.partialorder %v747, 0.0
        %vm780 = vcmp.gt.f32.partialorder %v748, 0.0
        %vm781 = vcmp.gt.f32.partialorder %v749, 0.0
        %vm782 = vcmp.gt.f32.partialorder %v750, 0.0
        %vm783 = vcmp.gt.f32.partialorder %v751, 0.0
        %vm784 = vcmp.gt.f32.partialorder %v752, 0.0
        %vm785 = vcmp.gt.f32.partialorder %v753, 0.0
        %vm786 = vcmp.gt.f32.partialorder %v754, 0.0
        %vm787 = vcmp.gt.f32.partialorder %v755, 0.0
        %vm788 = vcmp.gt.f32.partialorder %v756, 0.0
        %vm789 = vcmp.gt.f32.partialorder %v757, 0.0
        %vm790 = vcmp.gt.f32.partialorder %v758, 0.0
        %vm791 = vcmp.gt.f32.partialorder %v759, 0.0
        %vm792 = vcmp.gt.f32.partialorder %v760, 0.0
        %vm793 = vcmp.gt.f32.partialorder %v761, 0.0
        %vm794 = vcmp.gt.f32.partialorder %v762, 0.0
        %vm795 = vcmp.gt.f32.partialorder %v763, 0.0
        %vm796 = vcmp.gt.f32.partialorder %v764, 0.0
        %vm797 = vcmp.gt.f32.partialorder %v765, 0.0
        %vm798 = vcmp.gt.f32.partialorder %v766, 0.0
        %vm799 = vcmp.gt.f32.partialorder %v767, 0.0
        %vm800 = vcmp.gt.f32.partialorder %v768, 0.0
        %vm801 = vcmp.gt.f32.partialorder %v769, 0.0
        %vm802 = vcmp.gt.f32.partialorder %v770, 0.0
        %vm803 = vcmp.gt.f32.partialorder %v771, 0.0
        %vm804 = vcmp.gt.f32.partialorder %v772, 0.0
        %vm805 = vcmp.gt.f32.partialorder %v773, 0.0
        %vm806 = vcmp.gt.f32.partialorder %v774, 0.0
        %vm807 = vcmp.gt.f32.partialorder %v775, 0.0
        %vm808 = vcmp.gt.f32.partialorder %v776, 0.0
        %vm809 = vcmp.gt.f32.partialorder %v777, 0.0
        %s810 = smul.f32 %s241, 0.5
        %v811 = vmax.f32 %v746, 1e-30
        %v812 = vmax.f32 %v747, 1e-30
        %v813 = vmax.f32 %v748, 1e-30
        %v814 = vmax.f32 %v749, 1e-30
        %v815 = vmax.f32 %v750, 1e-30
        %v816 = vmax.f32 %v751, 1e-30
        %v817 = vmax.f32 %v752, 1e-30
        %v818 = vmax.f32 %v753, 1e-30
        %v819 = vmax.f32 %v754, 1e-30
        %v820 = vmax.f32 %v755, 1e-30
        %v821 = vmax.f32 %v756, 1e-30
        %v822 = vmax.f32 %v757, 1e-30
        %v823 = vmax.f32 %v758, 1e-30
        %v824 = vmax.f32 %v759, 1e-30
        %v825 = vmax.f32 %v760, 1e-30
        %v826 = vmax.f32 %v761, 1e-30
        %v827 = vmax.f32 %v762, 1e-30
        %v828 = vmax.f32 %v763, 1e-30
        %v829 = vmax.f32 %v764, 1e-30
        %v830 = vmax.f32 %v765, 1e-30
        %v831 = vmax.f32 %v766, 1e-30
        %v832 = vmax.f32 %v767, 1e-30
        %v833 = vmax.f32 %v768, 1e-30
        %v834 = vmax.f32 %v769, 1e-30
        %v835 = vmax.f32 %v770, 1e-30
        %v836 = vmax.f32 %v771, 1e-30
        %v837 = vmax.f32 %v772, 1e-30
        %v838 = vmax.f32 %v773, 1e-30
        %v839 = vmax.f32 %v774, 1e-30
        %v840 = vmax.f32 %v775, 1e-30
        %v841 = vmax.f32 %v776, 1e-30
        %v842 = vmax.f32 %v777, 1e-30
        %v843 = vlog2.pop %v811
        %v844 = vmul.f32 %v843, 0.6931472
        %v845 = vlog2.pop %v812
        %v846 = vmul.f32 %v845, 0.6931472
        %v847 = vlog2.pop %v813
        %v848 = vmul.f32 %v847, 0.6931472
        %v849 = vlog2.pop %v814
        %v850 = vmul.f32 %v849, 0.6931472
        %v851 = vlog2.pop %v815
        %v852 = vmul.f32 %v851, 0.6931472
        %v853 = vlog2.pop %v816
        %v854 = vmul.f32 %v853, 0.6931472
        %v855 = vlog2.pop %v817
        %v856 = vmul.f32 %v855, 0.6931472
        %v857 = vlog2.pop %v818
        %v858 = vmul.f32 %v857, 0.6931472
        %v859 = vlog2.pop %v819
        %v860 = vmul.f32 %v859, 0.6931472
        %v861 = vlog2.pop %v820
        %v862 = vmul.f32 %v861, 0.6931472
        %v863 = vlog2.pop %v821
        %v864 = vmul.f32 %v863, 0.6931472
        %v865 = vlog2.pop %v822
        %v866 = vmul.f32 %v865, 0.6931472
        %v867 = vlog2.pop %v823
        %v868 = vmul.f32 %v867, 0.6931472
        %v869 = vlog2.pop %v824
        %v870 = vmul.f32 %v869, 0.6931472
        %v871 = vlog2.pop %v825
        %v872 = vmul.f32 %v871, 0.6931472
        %v873 = vlog2.pop %v826
        %v874 = vmul.f32 %v873, 0.6931472
        %v875 = vlog2.pop %v827
        %v876 = vmul.f32 %v875, 0.6931472
        %v877 = vlog2.pop %v828
        %v878 = vmul.f32 %v877, 0.6931472
        %v879 = vlog2.pop %v829
        %v880 = vmul.f32 %v879, 0.6931472
        %v881 = vlog2.pop %v830
        %v882 = vmul.f32 %v881, 0.6931472
        %v883 = vlog2.pop %v831
        %v884 = vmul.f32 %v883, 0.6931472
        %v885 = vlog2.pop %v832
        %v886 = vmul.f32 %v885, 0.6931472
        %v887 = vlog2.pop %v833
        %v888 = vmul.f32 %v887, 0.6931472
        %v889 = vlog2.pop %v834
        %v890 = vmul.f32 %v889, 0.6931472
        %v891 = vlog2.pop %v835
        %v892 = vmul.f32 %v891, 0.6931472
        %v893 = vlog2.pop %v836
        %v894 = vmul.f32 %v893, 0.6931472
        %v895 = vlog2.pop %v837
        %v896 = vmul.f32 %v895, 0.6931472
        %v897 = vlog2.pop %v838
        %v898 = vmul.f32 %v897, 0.6931472
        %v899 = vlog2.pop %v839
        %v900 = vmul.f32 %v899, 0.6931472
        %v901 = vlog2.pop %v840
        %v902 = vmul.f32 %v901, 0.6931472
        %v903 = vlog2.pop %v841
        %v904 = vmul.f32 %v903, 0.6931472
        %v905 = vlog2.pop %v842
        %v906 = vmul.f32 %v905, 0.6931472
        %v907 = vstv %s810
        %v908 = vmul.f32 %v907, %v844
        %v909 = vmul.f32 %v907, %v846
        %v910 = vmul.f32 %v907, %v848
        %v911 = vmul.f32 %v907, %v850
        %v912 = vmul.f32 %v907, %v852
        %v913 = vmul.f32 %v907, %v854
        %v914 = vmul.f32 %v907, %v856
        %v915 = vmul.f32 %v907, %v858
        %v916 = vmul.f32 %v907, %v860
        %v917 = vmul.f32 %v907, %v862
        %v918 = vmul.f32 %v907, %v864
        %v919 = vmul.f32 %v907, %v866
        %v920 = vmul.f32 %v907, %v868
        %v921 = vmul.f32 %v907, %v870
        %v922 = vmul.f32 %v907, %v872
        %v923 = vmul.f32 %v907, %v874
        %v924 = vmul.f32 %v907, %v876
        %v925 = vmul.f32 %v907, %v878
        %v926 = vmul.f32 %v907, %v880
        %v927 = vmul.f32 %v907, %v882
        %v928 = vmul.f32 %v907, %v884
        %v929 = vmul.f32 %v907, %v886
        %v930 = vmul.f32 %v907, %v888
        %v931 = vmul.f32 %v907, %v890
        %v932 = vmul.f32 %v907, %v892
        %v933 = vmul.f32 %v907, %v894
        %v934 = vmul.f32 %v907, %v896
        %v935 = vmul.f32 %v907, %v898
        %v936 = vmul.f32 %v907, %v900
        %v937 = vmul.f32 %v907, %v902
        %v938 = vmul.f32 %v907, %v904
        %v939 = vmul.f32 %v907, %v906
        %v940 = vmul.f32 %v908, 1.442695
        %v941 = vpow.pop %v940
        %v942 = vmul.f32 %v909, 1.442695
        %v943 = vpow.pop %v942
        %v944 = vmul.f32 %v910, 1.442695
        %v945 = vpow.pop %v944
        %v946 = vmul.f32 %v911, 1.442695
        %v947 = vpow.pop %v946
        %v948 = vmul.f32 %v912, 1.442695
        %v949 = vpow.pop %v948
        %v950 = vmul.f32 %v913, 1.442695
        %v951 = vpow.pop %v950
        %v952 = vmul.f32 %v914, 1.442695
        %v953 = vpow.pop %v952
        %v954 = vmul.f32 %v915, 1.442695
        %v955 = vpow.pop %v954
        %v956 = vmul.f32 %v916, 1.442695
        %v957 = vpow.pop %v956
        %v958 = vmul.f32 %v917, 1.442695
        %v959 = vpow.pop %v958
        %v960 = vmul.f32 %v918, 1.442695
        %v961 = vpow.pop %v960
        %v962 = vmul.f32 %v919, 1.442695
        %v963 = vpow.pop %v962
        %v964 = vmul.f32 %v920, 1.442695
        %v965 = vpow.pop %v964
        %v966 = vmul.f32 %v921, 1.442695
        %v967 = vpow.pop %v966
        %v968 = vmul.f32 %v922, 1.442695
        %v969 = vpow.pop %v968
        %v970 = vmul.f32 %v923, 1.442695
        %v971 = vpow.pop %v970
        %v972 = vmul.f32 %v924, 1.442695
        %v973 = vpow.pop %v972
        %v974 = vmul.f32 %v925, 1.442695
        %v975 = vpow.pop %v974
        %v976 = vmul.f32 %v926, 1.442695
        %v977 = vpow.pop %v976
        %v978 = vmul.f32 %v927, 1.442695
        %v979 = vpow.pop %v978
        %v980 = vmul.f32 %v928, 1.442695
        %v981 = vpow.pop %v980
        %v982 = vmul.f32 %v929, 1.442695
        %v983 = vpow.pop %v982
        %v984 = vmul.f32 %v930, 1.442695
        %v985 = vpow.pop %v984
        %v986 = vmul.f32 %v931, 1.442695
        %v987 = vpow.pop %v986
        %v988 = vmul.f32 %v932, 1.442695
        %v989 = vpow.pop %v988
        %v990 = vmul.f32 %v933, 1.442695
        %v991 = vpow.pop %v990
        %v992 = vmul.f32 %v934, 1.442695
        %v993 = vpow.pop %v992
        %v994 = vmul.f32 %v935, 1.442695
        %v995 = vpow.pop %v994
        %v996 = vmul.f32 %v936, 1.442695
        %v997 = vpow.pop %v996
        %v998 = vmul.f32 %v937, 1.442695
        %v999 = vpow.pop %v998
        %v1000 = vmul.f32 %v938, 1.442695
        %v1001 = vpow.pop %v1000
        %v1002 = vmul.f32 %v939, 1.442695
        %v1003 = vpow.pop %v1002
        %v1004 = vsel %vm778, %v941, 0.0
        %v1005 = vsel %vm779, %v943, 0.0
        %v1006 = vsel %vm780, %v945, 0.0
        %v1007 = vsel %vm781, %v947, 0.0
        %v1008 = vsel %vm782, %v949, 0.0
        %v1009 = vsel %vm783, %v951, 0.0
        %v1010 = vsel %vm784, %v953, 0.0
        %v1011 = vsel %vm785, %v955, 0.0
        %v1012 = vsel %vm786, %v957, 0.0
        %v1013 = vsel %vm787, %v959, 0.0
        %v1014 = vsel %vm788, %v961, 0.0
        %v1015 = vsel %vm789, %v963, 0.0
        %v1016 = vsel %vm790, %v965, 0.0
        %v1017 = vsel %vm791, %v967, 0.0
        %v1018 = vsel %vm792, %v969, 0.0
        %v1019 = vsel %vm793, %v971, 0.0
        %v1020 = vsel %vm794, %v973, 0.0
        %v1021 = vsel %vm795, %v975, 0.0
        %v1022 = vsel %vm796, %v977, 0.0
        %v1023 = vsel %vm797, %v979, 0.0
        %v1024 = vsel %vm798, %v981, 0.0
        %v1025 = vsel %vm799, %v983, 0.0
        %v1026 = vsel %vm800, %v985, 0.0
        %v1027 = vsel %vm801, %v987, 0.0
        %v1028 = vsel %vm802, %v989, 0.0
        %v1029 = vsel %vm803, %v991, 0.0
        %v1030 = vsel %vm804, %v993, 0.0
        %v1031 = vsel %vm805, %v995, 0.0
        %v1032 = vsel %vm806, %v997, 0.0
        %v1033 = vsel %vm807, %v999, 0.0
        %v1034 = vsel %vm808, %v1001, 0.0
        %v1035 = vsel %vm809, %v1003, 0.0
        %v1036 = vadd.f32 %v1004, 1e-06
        %v1037 = vadd.f32 %v1005, 1e-06
        %v1038 = vadd.f32 %v1006, 1e-06
        %v1039 = vadd.f32 %v1007, 1e-06
        %v1040 = vadd.f32 %v1008, 1e-06
        %v1041 = vadd.f32 %v1009, 1e-06
        %v1042 = vadd.f32 %v1010, 1e-06
        %v1043 = vadd.f32 %v1011, 1e-06
        %v1044 = vadd.f32 %v1012, 1e-06
        %v1045 = vadd.f32 %v1013, 1e-06
        %v1046 = vadd.f32 %v1014, 1e-06
        %v1047 = vadd.f32 %v1015, 1e-06
        %v1048 = vadd.f32 %v1016, 1e-06
        %v1049 = vadd.f32 %v1017, 1e-06
        %v1050 = vadd.f32 %v1018, 1e-06
        %v1051 = vadd.f32 %v1019, 1e-06
        %v1052 = vadd.f32 %v1020, 1e-06
        %v1053 = vadd.f32 %v1021, 1e-06
        %v1054 = vadd.f32 %v1022, 1e-06
        %v1055 = vadd.f32 %v1023, 1e-06
        %v1056 = vadd.f32 %v1024, 1e-06
        %v1057 = vadd.f32 %v1025, 1e-06
        %v1058 = vadd.f32 %v1026, 1e-06
        %v1059 = vadd.f32 %v1027, 1e-06
        %v1060 = vadd.f32 %v1028, 1e-06
        %v1061 = vadd.f32 %v1029, 1e-06
        %v1062 = vadd.f32 %v1030, 1e-06
        %v1063 = vadd.f32 %v1031, 1e-06
        %v1064 = vadd.f32 %v1032, 1e-06
        %v1065 = vadd.f32 %v1033, 1e-06
        %v1066 = vadd.f32 %v1034, 1e-06
        %v1067 = vadd.f32 %v1035, 1e-06
        %v1068 = vrcp.pop %v1036
        %v1069 = vmul.f32 1.0, %v1068
        %v1070 = vrcp.pop %v1037
        %v1071 = vmul.f32 1.0, %v1070
        %v1072 = vrcp.pop %v1038
        %v1073 = vmul.f32 1.0, %v1072
        %v1074 = vrcp.pop %v1039
        %v1075 = vmul.f32 1.0, %v1074
        %v1076 = vrcp.pop %v1040
        %v1077 = vmul.f32 1.0, %v1076
        %v1078 = vrcp.pop %v1041
        %v1079 = vmul.f32 1.0, %v1078
        %v1080 = vrcp.pop %v1042
        %v1081 = vmul.f32 1.0, %v1080
        %v1082 = vrcp.pop %v1043
        %v1083 = vmul.f32 1.0, %v1082
        %v1084 = vrcp.pop %v1044
        %v1085 = vmul.f32 1.0, %v1084
        %v1086 = vrcp.pop %v1045
        %v1087 = vmul.f32 1.0, %v1086
        %v1088 = vrcp.pop %v1046
        %v1089 = vmul.f32 1.0, %v1088
        %v1090 = vrcp.pop %v1047
        %v1091 = vmul.f32 1.0, %v1090
        %v1092 = vrcp.pop %v1048
        %v1093 = vmul.f32 1.0, %v1092
        %v1094 = vrcp.pop %v1049
        %v1095 = vmul.f32 1.0, %v1094
        %v1096 = vrcp.pop %v1050
        %v1097 = vmul.f32 1.0, %v1096
        %v1098 = vrcp.pop %v1051
        %v1099 = vmul.f32 1.0, %v1098
        %v1100 = vrcp.pop %v1052
        %v1101 = vmul.f32 1.0, %v1100
        %v1102 = vrcp.pop %v1053
        %v1103 = vmul.f32 1.0, %v1102
        %v1104 = vrcp.pop %v1054
        %v1105 = vmul.f32 1.0, %v1104
        %v1106 = vrcp.pop %v1055
        %v1107 = vmul.f32 1.0, %v1106
        %v1108 = vrcp.pop %v1056
        %v1109 = vmul.f32 1.0, %v1108
        %v1110 = vrcp.pop %v1057
        %v1111 = vmul.f32 1.0, %v1110
        %v1112 = vrcp.pop %v1058
        %v1113 = vmul.f32 1.0, %v1112
        %v1114 = vrcp.pop %v1059
        %v1115 = vmul.f32 1.0, %v1114
        %v1116 = vrcp.pop %v1060
        %v1117 = vmul.f32 1.0, %v1116
        %v1118 = vrcp.pop %v1061
        %v1119 = vmul.f32 1.0, %v1118
        %v1120 = vrcp.pop %v1062
        %v1121 = vmul.f32 1.0, %v1120
        %v1122 = vrcp.pop %v1063
        %v1123 = vmul.f32 1.0, %v1122
        %v1124 = vrcp.pop %v1064
        %v1125 = vmul.f32 1.0, %v1124
        %v1126 = vrcp.pop %v1065
        %v1127 = vmul.f32 1.0, %v1126
        %v1128 = vrcp.pop %v1066
        %v1129 = vmul.f32 1.0, %v1128
        %v1130 = vrcp.pop %v1067
        %v1131 = vmul.f32 1.0, %v1130
        %1132 = vst [vmem:[%s227] sm:$0xff] %v1069
        %1133 = vst [vmem:[%s227 + $0x8] sm:$0xff] %v1071
        %1134 = vst [vmem:[%s227 + $0x10] sm:$0xff] %v1073
        %1135 = vst [vmem:[%s227 + $0x18] sm:$0xff] %v1075
        %1136 = vst [vmem:[%s227 + $0x20] sm:$0xff] %v1077
        %1137 = vst [vmem:[%s227 + $0x28] sm:$0xff] %v1079
        %1138 = vst [vmem:[%s227 + $0x30] sm:$0xff] %v1081
        %1139 = vst [vmem:[%s227 + $0x38] sm:$0xff] %v1083
        %1140 = vst [vmem:[%s227 + $0x40] sm:$0xff] %v1085
        %1141 = vst [vmem:[%s227 + $0x48] sm:$0xff] %v1087
        %1142 = vst [vmem:[%s227 + $0x50] sm:$0xff] %v1089
        %1143 = vst [vmem:[%s227 + $0x58] sm:$0xff] %v1091
        %1144 = vst [vmem:[%s227 + $0x60] sm:$0xff] %v1093
        %1145 = vst [vmem:[%s227 + $0x68] sm:$0xff] %v1095
        %1146 = vst [vmem:[%s227 + $0x70] sm:$0xff] %v1097
        %1147 = vst [vmem:[%s227 + $0x78] sm:$0xff] %v1099
        %1148 = vst [vmem:[%s227 + $0x80] sm:$0xff] %v1101
        %1149 = vst [vmem:[%s227 + $0x88] sm:$0xff] %v1103
        %1150 = vst [vmem:[%s227 + $0x90] sm:$0xff] %v1105
        %1151 = vst [vmem:[%s227 + $0x98] sm:$0xff] %v1107
        %1152 = vst [vmem:[%s227 + $0xa0] sm:$0xff] %v1109
        %1153 = vst [vmem:[%s227 + $0xa8] sm:$0xff] %v1111
        %1154 = vst [vmem:[%s227 + $0xb0] sm:$0xff] %v1113
        %1155 = vst [vmem:[%s227 + $0xb8] sm:$0xff] %v1115
        %1156 = vst [vmem:[%s227 + $0xc0] sm:$0xff] %v1117
        %1157 = vst [vmem:[%s227 + $0xc8] sm:$0xff] %v1119
        %1158 = vst [vmem:[%s227 + $0xd0] sm:$0xff] %v1121
        %1159 = vst [vmem:[%s227 + $0xd8] sm:$0xff] %v1123
        %1160 = vst [vmem:[%s227 + $0xe0] sm:$0xff] %v1125
        %1161 = vst [vmem:[%s227 + $0xe8] sm:$0xff] %v1127
        %1162 = vst [vmem:[%s227 + $0xf0] sm:$0xff] %v1129
        %1163 = vst [vmem:[%s227 + $0xf8] sm:$0xff] %v1131
        %v1164 = vld [vmem:[%s3] sm:$0xff]
        %v1165 = vld [vmem:[%s3 + $0x8] sm:$0xff]
        %v1166 = vld [vmem:[%s3 + $0x10] sm:$0xff]
        %v1167 = vld [vmem:[%s3 + $0x18] sm:$0xff]
        %v1168 = vld [vmem:[%s3 + $0x20] sm:$0xff]
        %v1169 = vld [vmem:[%s3 + $0x28] sm:$0xff]
        %v1170 = vld [vmem:[%s3 + $0x30] sm:$0xff]
        %v1171 = vld [vmem:[%s3 + $0x38] sm:$0xff]
        %v1172 = vld [vmem:[%s3 + $0x40] sm:$0xff]
        %v1173 = vld [vmem:[%s3 + $0x48] sm:$0xff]
        %v1174 = vld [vmem:[%s3 + $0x50] sm:$0xff]
        %v1175 = vld [vmem:[%s3 + $0x58] sm:$0xff]
        %v1176 = vld [vmem:[%s3 + $0x60] sm:$0xff]
        %v1177 = vld [vmem:[%s3 + $0x68] sm:$0xff]
        %v1178 = vld [vmem:[%s3 + $0x70] sm:$0xff]
        %v1179 = vld [vmem:[%s3 + $0x78] sm:$0xff]
        %v1180 = vld [vmem:[%s3 + $0x80] sm:$0xff]
        %v1181 = vld [vmem:[%s3 + $0x88] sm:$0xff]
        %v1182 = vld [vmem:[%s3 + $0x90] sm:$0xff]
        %v1183 = vld [vmem:[%s3 + $0x98] sm:$0xff]
        %v1184 = vld [vmem:[%s3 + $0xa0] sm:$0xff]
        %v1185 = vld [vmem:[%s3 + $0xa8] sm:$0xff]
        %v1186 = vld [vmem:[%s3 + $0xb0] sm:$0xff]
        %v1187 = vld [vmem:[%s3 + $0xb8] sm:$0xff]
        %v1188 = vld [vmem:[%s3 + $0xc0] sm:$0xff]
        %v1189 = vld [vmem:[%s3 + $0xc8] sm:$0xff]
        %v1190 = vld [vmem:[%s3 + $0xd0] sm:$0xff]
        %v1191 = vld [vmem:[%s3 + $0xd8] sm:$0xff]
        %v1192 = vld [vmem:[%s3 + $0xe0] sm:$0xff]
        %v1193 = vld [vmem:[%s3 + $0xe8] sm:$0xff]
        %v1194 = vld [vmem:[%s3 + $0xf0] sm:$0xff]
        %v1195 = vld [vmem:[%s3 + $0xf8] sm:$0xff]
        %1196 = vmatprep.subr.mxu0 0.0
        %1197 = vmatpush1.msra.mxu0 %v1164
        %1198 = vmatprep.subr.mxu0 0.0
        %1199 = vmatpush1.msra.mxu0 %v1165
        %1200 = vmatprep.subr.mxu0 0.0
        %1201 = vmatpush1.msra.mxu0 %v1166
        %1202 = vmatprep.subr.mxu0 0.0
        %1203 = vmatpush1.msra.mxu0 %v1167
        %1204 = vmatprep.subr.mxu0 0.0
        %1205 = vmatpush1.msra.mxu0 %v1168
        %1206 = vmatprep.subr.mxu0 0.0
        %1207 = vmatpush1.msra.mxu0 %v1169
        %1208 = vmatprep.subr.mxu0 0.0
        %1209 = vmatpush1.msra.mxu0 %v1170
        %1210 = vmatprep.subr.mxu0 0.0
        %1211 = vmatpush1.msra.mxu0 %v1171
        %1212 = vmatprep.subr.mxu0 0.0
        %1213 = vmatpush1.msra.mxu0 %v1172
        %1214 = vmatprep.subr.mxu0 0.0
        %1215 = vmatpush1.msra.mxu0 %v1173
        %1216 = vmatprep.subr.mxu0 0.0
        %1217 = vmatpush1.msra.mxu0 %v1174
        %1218 = vmatprep.subr.mxu0 0.0
        %1219 = vmatpush1.msra.mxu0 %v1175
        %1220 = vmatprep.subr.mxu0 0.0
        %1221 = vmatpush1.msra.mxu0 %v1176
        %1222 = vmatprep.subr.mxu0 0.0
        %1223 = vmatpush1.msra.mxu0 %v1177
        %1224 = vmatprep.subr.mxu0 0.0
        %1225 = vmatpush1.msra.mxu0 %v1178
        %1226 = vmatprep.subr.mxu0 0.0
        %1227 = vmatpush1.msra.mxu0 %v1179
        %1228 = vmatprep.subr.mxu0 0.0
        %1229 = vmatpush1.msra.mxu0 %v1180
        %1230 = vmatprep.subr.mxu0 0.0
        %1231 = vmatpush1.msra.mxu0 %v1181
        %1232 = vmatprep.subr.mxu0 0.0
        %1233 = vmatpush1.msra.mxu0 %v1182
        %1234 = vmatprep.subr.mxu0 0.0
        %1235 = vmatpush1.msra.mxu0 %v1183
        %1236 = vmatprep.subr.mxu0 0.0
        %1237 = vmatpush1.msra.mxu0 %v1184
        %1238 = vmatprep.subr.mxu0 0.0
        %1239 = vmatpush1.msra.mxu0 %v1185
        %1240 = vmatprep.subr.mxu0 0.0
        %1241 = vmatpush1.msra.mxu0 %v1186
        %1242 = vmatprep.subr.mxu0 0.0
        %1243 = vmatpush1.msra.mxu0 %v1187
        %1244 = vmatprep.subr.mxu0 0.0
        %1245 = vmatpush1.msra.mxu0 %v1188
        %1246 = vmatprep.subr.mxu0 0.0
        %1247 = vmatpush1.msra.mxu0 %v1189
        %1248 = vmatprep.subr.mxu0 0.0
        %1249 = vmatpush1.msra.mxu0 %v1190
        %1250 = vmatprep.subr.mxu0 0.0
        %1251 = vmatpush1.msra.mxu0 %v1191
        %1252 = vmatprep.subr.mxu0 0.0
        %1253 = vmatpush1.msra.mxu0 %v1192
        %1254 = vmatprep.subr.mxu0 0.0
        %1255 = vmatpush1.msra.mxu0 %v1193
        %1256 = vmatprep.subr.mxu0 0.0
        %1257 = vmatpush1.msra.mxu0 %v1194
        %1258 = vmatprep.subr.mxu0 0.0
        %1259 = vmatpush1.msra.mxu0 %v1195
        %1260 = vmatprep.mubr.f32.mxu0 %v1071
        %1261 = vmatmul.mubr.f32.gmra.mrb[0].mxu0 %v1069
        %v1262 = vpop.f32.mrb[0].mxu0
        %v1263 = vadd.f32 0.0, %v1262
        %v1264 = vpop.f32.mrb[0].mxu0
        %1265 = vmatprep.mubr.f32.mxu0 %v1075
        %1266 = vmatmul.mubr.f32.gmra.mrb[0].mxu0 %v1073
        %v1267 = vpop.f32.mrb[0].mxu0
        %v1268 = vadd.f32 0.0, %v1267
        %v1269 = vpop.f32.mrb[0].mxu0
        %1270 = vmatprep.mubr.f32.mxu0 %v1079
        %1271 = vmatmul.mubr.f32.gmra.mrb[0].mxu0 %v1077
        %v1272 = vpop.f32.mrb[0].mxu0
        %v1273 = vadd.f32 0.0, %v1272
        %v1274 = vpop.f32.mrb[0].mxu0
        %1275 = vmatprep.mubr.f32.mxu0 %v1083
        %1276 = vmatmul.mubr.f32.gmra.mrb[0].mxu0 %v1081
        %v1277 = vpop.f32.mrb[0].mxu0
        %v1278 = vadd.f32 0.0, %v1277
        %v1279 = vpop.f32.mrb[0].mxu0
        %1280 = vmatprep.mubr.f32.mxu0 %v1087
        %1281 = vmatmul.mubr.f32.gmra.mrb[0].mxu0 %v1085
        %v1282 = vpop.f32.mrb[0].mxu0
        %v1283 = vadd.f32 0.0, %v1282
        %v1284 = vpop.f32.mrb[0].mxu0
        %1285 = vmatprep.mubr.f32.mxu0 %v1091
        %1286 = vmatmul.mubr.f32.gmra.mrb[0].mxu0 %v1089
        %v1287 = vpop.f32.mrb[0].mxu0
        %v1288 = vadd.f32 0.0, %v1287
        %v1289 = vpop.f32.mrb[0].mxu0
        %1290 = vmatprep.mubr.f32.mxu0 %v1095
        %1291 = vmatmul.mubr.f32.gmra.mrb[0].mxu0 %v1093
        %v1292 = vpop.f32.mrb[0].mxu0
        %v1293 = vadd.f32 0.0, %v1292
        %v1294 = vpop.f32.mrb[0].mxu0
        %1295 = vmatprep.mubr.f32.mxu0 %v1099
        %1296 = vmatmul.mubr.f32.gmra.mrb[0].mxu0 %v1097
        %v1297 = vpop.f32.mrb[0].mxu0
        %v1298 = vadd.f32 0.0, %v1297
        %v1299 = vpop.f32.mrb[0].mxu0
        %1300 = vmatprep.mubr.f32.mxu0 %v1103
        %1301 = vmatmul.mubr.f32.gmra.mrb[0].mxu0 %v1101
        %v1302 = vpop.f32.mrb[0].mxu0
        %v1303 = vadd.f32 0.0, %v1302
        %v1304 = vpop.f32.mrb[0].mxu0
        %1305 = vmatprep.mubr.f32.mxu0 %v1107
        %1306 = vmatmul.mubr.f32.gmra.mrb[0].mxu0 %v1105
        %v1307 = vpop.f32.mrb[0].mxu0
        %v1308 = vadd.f32 0.0, %v1307
        %v1309 = vpop.f32.mrb[0].mxu0
        %1310 = vmatprep.mubr.f32.mxu0 %v1111
        %1311 = vmatmul.mubr.f32.gmra.mrb[0].mxu0 %v1109
        %v1312 = vpop.f32.mrb[0].mxu0
        %v1313 = vadd.f32 0.0, %v1312
        %v1314 = vpop.f32.mrb[0].mxu0
        %1315 = vmatprep.mubr.f32.mxu0 %v1115
        %1316 = vmatmul.mubr.f32.gmra.mrb[0].mxu0 %v1113
        %v1317 = vpop.f32.mrb[0].mxu0
        %v1318 = vadd.f32 0.0, %v1317
        %v1319 = vpop.f32.mrb[0].mxu0
        %1320 = vmatprep.mubr.f32.mxu0 %v1119
        %1321 = vmatmul.mubr.f32.gmra.mrb[0].mxu0 %v1117
        %v1322 = vpop.f32.mrb[0].mxu0
        %v1323 = vadd.f32 0.0, %v1322
        %v1324 = vpop.f32.mrb[0].mxu0
        %1325 = vmatprep.mubr.f32.mxu0 %v1123
        %1326 = vmatmul.mubr.f32.gmra.mrb[0].mxu0 %v1121
        %v1327 = vpop.f32.mrb[0].mxu0
        %v1328 = vadd.f32 0.0, %v1327
        %v1329 = vpop.f32.mrb[0].mxu0
        %1330 = vmatprep.mubr.f32.mxu0 %v1127
        %1331 = vmatmul.mubr.f32.gmra.mrb[0].mxu0 %v1125
        %v1332 = vpop.f32.mrb[0].mxu0
        %v1333 = vadd.f32 0.0, %v1332
        %v1334 = vpop.f32.mrb[0].mxu0
        %1335 = vmatprep.mubr.f32.mxu0 %v1131
        %1336 = vmatmul.mubr.f32.gmra.mrb[0].mxu0 %v1129
        %v1337 = vpop.f32.mrb[0].mxu0
        %v1338 = vadd.f32 0.0, %v1337
        %v1339 = vpop.f32.mrb[0].mxu0
        %1340 = vdwg.mxu0
        %1357 = vrot.lane.b32.xlu0 %v1263, 127
        %v1358 = vpop.permute.xlu0 %1357
        %1359 = vrot.lane.b32.xlu0 %v1268, 127
        %v1360 = vpop.permute.xlu0 %1359
        %1361 = vrot.lane.b32.xlu0 %v1273, 127
        %v1362 = vpop.permute.xlu0 %1361
        %1363 = vrot.lane.b32.xlu0 %v1278, 127
        %v1364 = vpop.permute.xlu0 %1363
        %1365 = vrot.lane.b32.xlu0 %v1283, 127
        %v1366 = vpop.permute.xlu0 %1365
        %1367 = vrot.lane.b32.xlu0 %v1288, 127
        %v1368 = vpop.permute.xlu0 %1367
        %1369 = vrot.lane.b32.xlu0 %v1293, 127
        %v1370 = vpop.permute.xlu0 %1369
        %1371 = vrot.lane.b32.xlu0 %v1298, 127
        %v1372 = vpop.permute.xlu0 %1371
        %1373 = vrot.lane.b32.xlu0 %v1303, 127
        %v1374 = vpop.permute.xlu0 %1373
        %1375 = vrot.lane.b32.xlu0 %v1308, 127
        %v1376 = vpop.permute.xlu0 %1375
        %1377 = vrot.lane.b32.xlu0 %v1313, 127
        %v1378 = vpop.permute.xlu0 %1377
        %1379 = vrot.lane.b32.xlu0 %v1318, 127
        %v1380 = vpop.permute.xlu0 %1379
        %1381 = vrot.lane.b32.xlu0 %v1323, 127
        %v1382 = vpop.permute.xlu0 %1381
        %1383 = vrot.lane.b32.xlu0 %v1328, 127
        %v1384 = vpop.permute.xlu0 %1383
        %1385 = vrot.lane.b32.xlu0 %v1333, 127
        %v1386 = vpop.permute.xlu0 %1385
        %1387 = vrot.lane.b32.xlu0 %v1338, 127
        %v1388 = vpop.permute.xlu0 %1387
        %v1405 = vrcp.pop %v1358
        %v1406 = vmul.f32 %v1263, %v1405
        %v1407 = vrcp.pop %v1360
        %v1408 = vmul.f32 %v1268, %v1407
        %v1409 = vrcp.pop %v1362
        %v1410 = vmul.f32 %v1273, %v1409
        %v1411 = vrcp.pop %v1364
        %v1412 = vmul.f32 %v1278, %v1411
        %v1413 = vrcp.pop %v1366
        %v1414 = vmul.f32 %v1283, %v1413
        %v1415 = vrcp.pop %v1368
        %v1416 = vmul.f32 %v1288, %v1415
        %v1417 = vrcp.pop %v1370
        %v1418 = vmul.f32 %v1293, %v1417
        %v1419 = vrcp.pop %v1372
        %v1420 = vmul.f32 %v1298, %v1419
        %v1421 = vrcp.pop %v1374
        %v1422 = vmul.f32 %v1303, %v1421
        %v1423 = vrcp.pop %v1376
        %v1424 = vmul.f32 %v1308, %v1423
        %v1425 = vrcp.pop %v1378
        %v1426 = vmul.f32 %v1313, %v1425
        %v1427 = vrcp.pop %v1380
        %v1428 = vmul.f32 %v1318, %v1427
        %v1429 = vrcp.pop %v1382
        %v1430 = vmul.f32 %v1323, %v1429
        %v1431 = vrcp.pop %v1384
        %v1432 = vmul.f32 %v1328, %v1431
        %v1433 = vrcp.pop %v1386
        %v1434 = vmul.f32 %v1333, %v1433
        %v1435 = vrcp.pop %v1388
        %v1436 = vmul.f32 %v1338, %v1435
        %vm1437 = vcmask 7168
        %1438 = vst.msk [vmem:[%s238] sm:$0xff] %vm1437, %v1406
        %1439 = vst.msk [vmem:[%s238 + $0x8] sm:$0xff] %vm1437, %v1408
        %1440 = vst.msk [vmem:[%s238 + $0x10] sm:$0xff] %vm1437, %v1410
        %1441 = vst.msk [vmem:[%s238 + $0x18] sm:$0xff] %vm1437, %v1412
        %1442 = vst.msk [vmem:[%s238 + $0x20] sm:$0xff] %vm1437, %v1414
        %1443 = vst.msk [vmem:[%s238 + $0x28] sm:$0xff] %vm1437, %v1416
        %1444 = vst.msk [vmem:[%s238 + $0x30] sm:$0xff] %vm1437, %v1418
        %1445 = vst.msk [vmem:[%s238 + $0x38] sm:$0xff] %vm1437, %v1420
        %1446 = vst.msk [vmem:[%s238 + $0x40] sm:$0xff] %vm1437, %v1422
        %1447 = vst.msk [vmem:[%s238 + $0x48] sm:$0xff] %vm1437, %v1424
        %1448 = vst.msk [vmem:[%s238 + $0x50] sm:$0xff] %vm1437, %v1426
        %1449 = vst.msk [vmem:[%s238 + $0x58] sm:$0xff] %vm1437, %v1428
        %1450 = vst.msk [vmem:[%s238 + $0x60] sm:$0xff] %vm1437, %v1430
        %1451 = vst.msk [vmem:[%s238 + $0x68] sm:$0xff] %vm1437, %v1432
        %1452 = vst.msk [vmem:[%s238 + $0x70] sm:$0xff] %vm1437, %v1434
        %1453 = vst.msk [vmem:[%s238 + $0x78] sm:$0xff] %vm1437, %v1436
        %s1454 = smul.u32 16, %s21
        %p1455 = scmp.lt.s32.totalorder %s1454, 31
        %s1456 = scalar_select %p1455, %s1454, 31
        %s1457 = smul.addr %s1456, 8
        %s1458 = scalar_lea.vmem %s4, %s1457
        %s1459 = sand.u32 %s144, 1
        %s1460 = scalar_lea.sflag [#allocation4], %s1459
        %s1461 = sand.u32 %s144, 1
        %s1462 = smul.addr %s1461, 256
        %s1463 = scalar_lea.vmem [#allocation3], %s1462
        // Predicated region
        $region37: #{tpu_custom_call.1} parent=35 // pred_check
          %p1464 = pneg %p128
        $region38: #{tpu_custom_call.1} parent=35 // pred_check_branch
          %1466 = sbr.rel (%p1464) target = $region40
        $region39: #{tpu_custom_call.1} parent=35 // pred_region
          %s1467 = smul.u32 16, %s21
        $region40: #{tpu_custom_call.1} parent=35 // pred_fallthru
          _
        // Predicated region
        $region41: #{tpu_custom_call.1} parent=35 // pred_check
          %p1468 = pneg %p154
        $region42: #{tpu_custom_call.1} parent=35 // pred_check_branch
          %1470 = sbr.rel (%p1468) target = $region44
        $region43: #{tpu_custom_call.1} parent=35 // pred_region
          %s1471 = smul.u32 16, %s21
          %s1473 = ssub.s32 4096, 4096
          %1474 = vsyncadd %s1460, %s1473
          %s1475 = smul.addr %s1471, 2
          %s1476 = smul.addr %s1475, 128
          %s1477 = scalar_lea.hbm %s5, %s1476
          %s1478 = sshll.u32 %s1463, 4
          %s1479 = int_to_ptr.vmem [resolvable:$true] %s1478
          %1484 = dma.vmem_to_hbm [thread:$0]  %s1479, 4096, %s1477, %s1460, 256, 256, 16
        $region44: #{tpu_custom_call.1} parent=35 // pred_fallthru
          _
      $region36: #{tpu_custom_call.1} parent=5 // pred_fallthru
        _
      %p1485 = scmp.le.s32.totalorder 2, %s16
      // Predicated region
      $region45: #{tpu_custom_call.1} parent=5 // pred_check
        %p1486 = pneg %p1485
      $region46: #{tpu_custom_call.1} parent=5 // pred_check_branch
        %1488 = sbr.rel (%p1486) target = $region48
      $region47: #{tpu_custom_call.1} parent=5 // pred_region
        %s1489 = ssub.s32 %s16, 2
        // Predicated region
        $region49: #{tpu_custom_call.1} parent=47 // pred_check
          %p1490 = pneg %p134
        $region50: #{tpu_custom_call.1} parent=47 // pred_check_branch
          %1492 = sbr.rel (%p1490) target = $region52
        $region51: #{tpu_custom_call.1} parent=47 // pred_region
          %s1493 = smul.u32 16, %s22
          %p1494 = scmp.lt.s32.totalorder %s1493, 31
          %s1495 = scalar_select %p1494, %s1493, 31
          %s1496 = smul.addr %s1495, 8
          %s1497 = scalar_lea.vmem %s4, %s1496
        $region52: #{tpu_custom_call.1} parent=47 // pred_fallthru
          _
        // Predicated region
        $region53: #{tpu_custom_call.1} parent=47 // pred_check
          %p1498 = pneg %p160
        $region54: #{tpu_custom_call.1} parent=47 // pred_check_branch
          %1500 = sbr.rel (%p1498) target = $region56
        $region55: #{tpu_custom_call.1} parent=47 // pred_region
          %s1501 = sand.u32 %s145, 1
          %s1502 = scalar_lea.sflag [#allocation4], %s1501
          %s1503 = sand.u32 %s145, 1
          %s1504 = smul.addr %s1503, 256
          %s1505 = scalar_lea.vmem [#allocation3], %s1504
          %1506 = dma.done %s1502, 4096
        $region56: #{tpu_custom_call.1} parent=47 // pred_fallthru
          _
      $region48: #{tpu_custom_call.1} parent=5 // pred_fallthru
        _
    $region6: #{tpu_custom_call.1} parent=1 // loop_footer
      %s20 = sadd.s32 1, %s16
    $region7: #{tpu_custom_call.1} parent=1 // loop_footer_branch
      %15 = sbr.rel target = $region3
    $region8: #{tpu_custom_call.1} parent=1 // loop_exit
      _
    %1507 = vsyncpa [#allocation4], 1
    %s1508 = scalar_lea.sflag [#allocation4], 1
    %1509 = vsyncpa %s1508, 1

</llo_original>
